<compile_context>
chip_gen: v5e
topology: v5e:2x2
jax: 0.10.0
libtpu: 0.0.40
codegen_flags: <defaults>
</compile_context>

<pallas_src>
import math
import functools

import jax
import jax.numpy as jnp
from jax import lax
from jax.experimental import pallas as pl
from jax.experimental.pallas import tpu as pltpu


# ---------------------------------------------------------------------------
# Parameter setup (module __init__) -- plain JAX, not the hot path.
# ---------------------------------------------------------------------------
def make_positional_encoding_table(d_model: int, max_len: int = 5000):
    """Deterministic PE buffer, identical to the PyTorch __init__ ([L, 1, D])."""
    position = jnp.arange(max_len, dtype=jnp.float32)[:, None]              # [L, 1]
    div_term = jnp.exp(
        jnp.arange(0, d_model, 2, dtype=jnp.float32) * (-math.log(10000.0) / d_model)
    )                                                                        # [D/2]
    angles = position * div_term                                             # [L, D/2]
    pe = jnp.zeros((max_len, 1, d_model), dtype=jnp.float32)
    pe = pe.at[:, 0, 0::2].set(jnp.sin(angles))
    pe = pe.at[:, 0, 1::2].set(jnp.cos(angles))
    return pe


# ---------------------------------------------------------------------------
# In-kernel helpers
# ---------------------------------------------------------------------------
def _repeat_lanes(v, reps: int):
    """Repeat v: (ts, W) -> (ts, W*reps) along the lane axis via concatenation.

    Uses log-doubling so the op count is O(log reps).  Any ordering of the
    repeated pieces is correct because every D-wide chunk is identical.
    """
    if reps == 1:
        return v
    out = v
    n = 1
    while n * 2 <= reps:
        out = jnp.concatenate([out, out], axis=-1)
        n *= 2
    if n < reps:
        out = jnp.concatenate([out] + [v] * (reps - n), axis=-1)
    return out


# ---------------------------------------------------------------------------
# Kernels (all operate on dense 2-D tiles: x/out (ts, B*D), pe (ts, D))
# ---------------------------------------------------------------------------
def _add_pe_kernel(x_ref, pe_ref, out_ref, *, reps):
    y = x_ref[...] + _repeat_lanes(pe_ref[...], reps)     # native dtype math
    out_ref[...] = y.astype(out_ref.dtype)


def _add_pe_dropout_hw_kernel(seed_ref, x_ref, pe_ref, out_ref, *, reps, threshold, scale):
    # Inverted dropout with the on-chip hardware PRNG (TPU only).
    y = x_ref[...] + _repeat_lanes(pe_ref[...], reps)
    # Mix the grid position into the seed so each S-tile has its own stream.
    pltpu.prng_seed(seed_ref[0], pl.program_id(0))
    bits = pltpu.bitcast(pltpu.prng_random_bits(y.shape), jnp.uint32)
    keep = bits >= jnp.uint32(threshold)                   # single integer compare
    scaled = y * jnp.asarray(scale, dtype=y.dtype)
    out_ref[...] = jnp.where(keep, scaled, jnp.zeros((), y.dtype)).astype(out_ref.dtype)


def _add_pe_dropout_portable_kernel(seed_ref, x_ref, pe_ref, out_ref, *, reps, threshold, scale):
    # Counter-based hash dropout; used only when the TPU PRNG primitives are
    # unavailable (CPU / interpret execution).  Pure jnp/lax integer ops.
    y = x_ref[...] + _repeat_lanes(pe_ref[...], reps)
    rows, cols = y.shape
    r = lax.broadcasted_iota(jnp.uint32, y.shape, 0)
    c = lax.broadcasted_iota(jnp.uint32, y.shape, 1)
    idx = r * jnp.uint32(cols) + c
    tile = pl.program_id(0).astype(jnp.uint32)
    seed = seed_ref[0].astype(jnp.uint32)
    h = idx + tile * jnp.uint32((rows * cols) & 0xFFFFFFFF) + seed * jnp.uint32(0x9E3779B9)
    h = h ^ (h >> 16)
    h = h * jnp.uint32(0x7FEB352D)
    h = h ^ (h >> 15)
    h = h * jnp.uint32(0x846CA68B)
    h = h ^ (h >> 16)
    keep = h >= jnp.uint32(threshold)
    scaled = y * jnp.asarray(scale, dtype=y.dtype)
    out_ref[...] = jnp.where(keep, scaled, jnp.zeros((), y.dtype)).astype(out_ref.dtype)


# ---------------------------------------------------------------------------
# Tiling / wrapper
# ---------------------------------------------------------------------------
def _round_up(v: int, m: int) -> int:
    return -(-v // m) * m


def _vmem_capacity_bytes() -> int:
    try:
        return int(pltpu.get_tpu_info().vmem_capacity_bytes)
    except Exception:
        return 64 * 1024 * 1024   # conservative: v7x has 64 MiB per TensorCore


def _choose_seq_tile(S: int, per_row_bytes: int) -> int:
    """Pick the sequence-tile length (sublane dim of every block)."""
    budget = _vmem_capacity_bytes() // 4          # generous headroom
    ts = max(1, budget // max(per_row_bytes, 1))
    ts = int(min(ts, S, 2048))
    if S >= 16:
        # Guarantee >= 2 grid programs so v7x's two TensorCores both get work.
        ts = min(ts, (S // 2) // 8 * 8)
    if ts < S:
        # (ts, ·) block shapes require the sublane dim to be a multiple of 8
        # (or equal to the full array extent S).
        ts = max(8, ts - (ts % 8))
        ts = min(ts, S)
    else:
        ts = S
    return ts


def positional_encoding_forward(x, pe, *, p: float = 0.1, seed: int = 0,
                                training: bool = True):
    """x: [seq_len, batch, d_model]. Returns dropout(x + pe[:seq_len], p)."""
    S, B, D = x.shape
    W = B * D
    x2 = x.reshape(S, W)                          # free contiguous 2-D view
    pe_s = pe[:S, 0].astype(x.dtype)              # [S, D], dense, native dtype
    p_eff = float(p) if training else 0.0

    itemsize = x.dtype.itemsize
    # Double-buffered pipeline bytes per sequence row (lane-padded widths):
    #   x in + out: 2 arrays x 2 buffers x W x itemsize
    #   pe:         2 buffers x D x itemsize (dense 2-D block)
    per_row = 4 * _round_up(W, 128) * itemsize + 2 * _round_up(D, 128) * itemsize
    ts = _choose_seq_tile(S, per_row)
    grid = (pl.cdiv(S, ts),)

    x_spec = pl.BlockSpec((ts, W), lambda i: (i, 0))
    pe_spec = pl.BlockSpec((ts, D), lambda i: (i, 0))
    out_spec = pl.BlockSpec((ts, W), lambda i: (i, 0))
    out_shape = jax.ShapeDtypeStruct((S, W), x.dtype)

    cost = pl.CostEstimate(
        flops=2 * S * W,
        transcendentals=0,
        bytes_accessed=2 * S * W * itemsize + S * D * itemsize,
    )

    on_tpu = jax.default_backend() == "tpu"
    call_kwargs = {"cost_estimate": cost}
    if on_tpu:
        vmem_limit = int(min(_vmem_capacity_bytes(),
                             max(ts * per_row + (8 << 20), 32 << 20)))
        call_kwargs["compiler_params"] = pltpu.CompilerParams(
            dimension_semantics=("parallel",),    # megacore sharding on v7x
            vmem_limit_bytes=vmem_limit,
        )

    if p_eff <= 0.0:
        # Eval / p == 0 path: no PRNG at all.
        out2 = pl.pallas_call(
            functools.partial(_add_pe_kernel, reps=B),
            out_shape=out_shape,
            grid=grid,
            in_specs=[x_spec, pe_spec],
            out_specs=out_spec,
            **call_kwargs,
        )(x2, pe_s)
        return out2.reshape(S, B, D)

    threshold = min(int(round(p_eff * (1 << 32))), (1 << 32) - 1)
    scale = 1.0 / (1.0 - p_eff)
    seed_arr = jnp.asarray([seed], dtype=jnp.int32)
    seed_spec = pl.BlockSpec(memory_space=pltpu.MemorySpace.SMEM)

    kernel = _add_pe_dropout_hw_kernel if on_tpu else _add_pe_dropout_portable_kernel
    out2 = pl.pallas_call(
        functools.partial(kernel, reps=B, threshold=threshold, scale=scale),
        out_shape=out_shape,
        grid=grid,
        in_specs=[seed_spec, x_spec, pe_spec],
        out_specs=out_spec,
        **call_kwargs,
    )(seed_arr, x2, pe_s)
    return out2.reshape(S, B, D)
    # TODO(synk): for non-contiguous (strided) x inputs the wrapper reshape may
    # copy; callers should pass contiguous [S, B, D] activations.


# ---------------------------------------------------------------------------
# Self-test
# ---------------------------------------------------------------------------
if __name__ == "__main__":
    # Main path: [S=16, B=8, D=128] f32 -> 2 grid programs, lane-repeat x8.
    S, B, D = 16, 8, 128
    pe = make_positional_encoding_table(D, max_len=64)
    x = jax.random.normal(jax.random.PRNGKey(0), (S, B, D), dtype=jnp.float32)
    ref = x + pe[:S]

    # Eval mode (dropout disabled): must equal x + pe[:seq_len].
    out_eval = jax.block_until_ready(
        positional_encoding_forward(x, pe, p=0.1, training=False))
    assert out_eval.shape == x.shape and out_eval.dtype == x.dtype
    assert jnp.allclose(out_eval, ref, atol=1e-6), "eval-mode mismatch"

    # Training mode: every output is either 0 or (x+pe)/(1-p); ~p dropped.
    p = 0.1
    out_train = jax.block_until_ready(
        positional_encoding_forward(x, pe, p=p, seed=123, training=True))
    assert out_train.shape == x.shape and out_train.dtype == x.dtype
    kept_vals = ref / (1.0 - p)
    ok = jnp.logical_or(out_train == 0.0,
                        jnp.isclose(out_train, kept_vals, rtol=1e-5, atol=1e-6))
    assert bool(jnp.all(ok)), "training-mode dropout values mismatch"
    drop_frac = float(jnp.mean((out_train == 0.0).astype(jnp.float32)))
    assert 0.01 < drop_frac < 0.30, f"dropout rate implausible: {drop_frac}"

    # Batch = 1: fully dense flattened path, no lane repeat needed.
    S1, B1, D1 = 16, 1, 64
    pe1 = make_positional_encoding_table(D1, max_len=32)
    x1 = jax.random.normal(jax.random.PRNGKey(1), (S1, B1, D1), dtype=jnp.float32)
    out1 = jax.block_until_ready(
        positional_encoding_forward(x1, pe1, p=0.1, training=False))
    assert out1.shape == x1.shape
    assert jnp.allclose(out1, x1 + pe1[:S1], atol=1e-6), "B=1 path mismatch"

    # bf16 inputs: native-dtype math, pe streamed in bf16.
    xb = x.astype(jnp.bfloat16)
    outb = jax.block_until_ready(
        positional_encoding_forward(xb, pe, p=0.1, training=False))
    assert outb.dtype == jnp.bfloat16 and outb.shape == x.shape
    assert jnp.allclose(outb.astype(jnp.float32), ref, atol=5e-2, rtol=5e-2), \
        "bf16 path mismatch"

    print("KERNEL_OK")
</pallas_src>

<mosaic_0001>
module attributes {stable_mosaic.version = 11 : i64} {
  func.func @_add_pe_kernel(%arg0: i32, %arg1: memref<8x1024xf32, #tpu.memory_space<vmem>>, %arg2: memref<8x128xf32, #tpu.memory_space<vmem>>, %arg3: memref<8x1024xf32, #tpu.memory_space<vmem>>) attributes {dimension_semantics = [#tpu.dimension_semantics<arbitrary>], iteration_bounds = array<i64: 2>, scalar_prefetch = 0 : i64, scratch_operands = 0 : i64, tpu.core_type = #tpu.core_type<tc>, window_params = [{transform_indices = @transform_0, window_bounds = array<i64: 8, 1024>}, {transform_indices = @transform_1, window_bounds = array<i64: 8, 128>}, {transform_indices = @transform_2, window_bounds = array<i64: 8, 1024>}]} {
    %c0 = arith.constant 0 : index
    %c0_0 = arith.constant 0 : index
    %0 = vector.load %arg1[%c0, %c0_0] : memref<8x1024xf32, #tpu.memory_space<vmem>>, vector<8x1024xf32>
    %c0_1 = arith.constant 0 : index
    %c0_2 = arith.constant 0 : index
    %1 = vector.load %arg2[%c0_1, %c0_2] : memref<8x128xf32, #tpu.memory_space<vmem>>, vector<8x128xf32>
    %2 = tpu.concatenate %1, %1 in 1 : vector<8x128xf32>, vector<8x128xf32> -> vector<8x256xf32>
    %3 = tpu.concatenate %2, %2 in 1 : vector<8x256xf32>, vector<8x256xf32> -> vector<8x512xf32>
    %4 = tpu.concatenate %3, %3 in 1 : vector<8x512xf32>, vector<8x512xf32> -> vector<8x1024xf32>
    %5 = arith.addf %0, %4 : vector<8x1024xf32>
    %c0_3 = arith.constant 0 : index
    %c0_4 = arith.constant 0 : index
    %6 = vector.load %arg3[%c0_3, %c0_4] : memref<8x1024xf32, #tpu.memory_space<vmem>>, vector<8x1024xf32>
    tpu.vector_store %arg3[%c0_3, %c0_4], %5 {strides = array<i32>} : memref<8x1024xf32, #tpu.memory_space<vmem>>, vector<8x1024xf32>,
    return
  }
  func.func @transform_0(%arg0: i32) -> (i32, i32) {
    %c0_i32 = arith.constant 0 : i32
    %c0_i32_0 = arith.constant 0 : i32
    return %arg0, %c0_i32 : i32, i32
  }
  func.func @transform_1(%arg0: i32) -> (i32, i32) {
    %c0_i32 = arith.constant 0 : i32
    %c0_i32_0 = arith.constant 0 : i32
    return %arg0, %c0_i32 : i32, i32
  }
  func.func @transform_2(%arg0: i32) -> (i32, i32) {
    %c0_i32 = arith.constant 0 : i32
    %c0_i32_0 = arith.constant 0 : i32
    return %arg0, %c0_i32 : i32, i32
  }
}

</mosaic_0001>

<llo_original>
// kernel: tpu_custom_call.1
$region0: #{tpu_custom_call.1}
  #allocation0 [shape = 'u32[]', space=smem, size = 0x4, offset = 0x4, fixed_abs, tag = 'smem constant byte address 0x4 - core index']
  #allocation1 [shape = 'u32[72,128]{1,0:T(1,128)}', space=vmem, size = 0x9000, scoped, tag = 'internal scratch']
  %s0 = inlined_call_operand.hbm [shape: f32[16,1024], index: 0, kind: input, shape index: {}]
  %s1 = inlined_call_operand.hbm [shape: f32[16,128], index: 1, kind: input, shape index: {}]
  %s2 = inlined_call_operand.hbm [shape: f32[16,1024], index: 2, kind: output, shape index: {}]
  %s3 = sld [smem:[#allocation0]]
  $region49: #{tpu_custom_call.1} parent=0
    _
  %s5 = ssub.s32 1, %s3
  %s6 = scalar_select 0, %s5, %s3
  $region1: #{tpu_custom_call.1} parent=0
    #allocation2 [shape = 'u8[65536]{0}', space=vmem, size = 0x10000, scoped, tag = 'input window, operand 0']
    #allocation3 [shape = 's32[2]{0}', space=sflag, size = 0x8, scoped, tag = 'scoped memory for tpu_custom_call.1']
    #allocation4 [shape = 's32[2]{0}', space=sflag, size = 0x8, scoped, tag = 'scoped memory for tpu_custom_call.1']
    #allocation5 [shape = 'u8[8192]{0}', space=vmem, size = 0x2000, scoped, tag = 'input window, operand 1']
    #allocation6 [shape = 's32[2]{0}', space=sflag, size = 0x8, scoped, tag = 'scoped memory for tpu_custom_call.1']
    #allocation7 [shape = 'u8[65536]{0}', space=vmem, size = 0x10000, scoped, tag = 'output window, operand 0']
    %7 = vsyncpa [#allocation3], 0
    %s8 = scalar_lea.sflag [#allocation3], 1
    %9 = vsyncpa %s8, 0
    %10 = vsyncpa [#allocation6], 0
    %s11 = scalar_lea.sflag [#allocation6], 1
    %12 = vsyncpa %s11, 0
    %13 = vsyncpa [#allocation4], 0
    %s14 = scalar_lea.sflag [#allocation4], 1
    %15 = vsyncpa %s14, 0
    loop: start=0, step=1, limit=4
    $region2: #{tpu_custom_call.1} parent=1 // loop_pre_header
      _
    $region3: #{tpu_custom_call.1} parent=1 // loop_header
      %s17 = sphi 0, %s21
      %p18 = scmp.ge.s32.totalorder %s17, 4
      %s27 = sphi 0, %s29
      %s30 = sphi 0, %s27
      %s31 = sphi 0, %s30
      %s47 = sphi 0, %s31
      %s53 = sphi 0, %s55
      %s56 = sphi 0, %s53
      %s57 = sphi 0, %s56
      %s73 = sphi 0, %s57
      %s79 = sphi 0, %s81
      %s82 = sphi 0, %s79
      %s83 = sphi 0, %s82
      %s99 = sphi 0, %s83
    $region4: #{tpu_custom_call.1} parent=1 // loop_header_branch
      %20 = sbr.rel (%p18) target = $region8
    $region5: #{tpu_custom_call.1} parent=1 // loop_body
      %s22 = ssub.s32 %s17, 1
      %s23 = ssub.s32 %s17, 2
      %s24 = sadd.s32 %s17, 1
      %s25 = ssub.s32 %s17, %s24
      %p26 = scmp.eq.s32.totalorder %s25, 0
      %s28 = sadd.s32 %s27, 1
      %s29 = scalar_select %p26, %s27, %s28
      %p32 = pneg %p26
      %p33 = scmp.eq.s32.totalorder %s17, 1
      %p34 = por %p32, %p33
      %p35 = scmp.ne.s32.totalorder %s27, %s30
      %p36 = scmp.eq.s32.totalorder %s17, 0
      %p37 = por %p35, %p36
      %p38 = scmp.ne.s32.totalorder %s27, %s30
      %p39 = scmp.eq.s32.totalorder %s22, 1
      %p40 = por %p38, %p39
      %p41 = scmp.ne.s32.totalorder %s30, %s31
      %p42 = scmp.eq.s32.totalorder %s22, 0
      %p43 = por %p41, %p42
      %p44 = scmp.ne.s32.totalorder %s30, %s31
      %p45 = scmp.eq.s32.totalorder %s23, 1
      %p46 = por %p44, %p45
      %p48 = scmp.ne.s32.totalorder %s31, %s47
      %p49 = scmp.eq.s32.totalorder %s23, 0
      %p50 = por %p48, %p49
      %s51 = ssub.s32 %s17, %s24
      %p52 = scmp.eq.s32.totalorder %s51, 0
      %s54 = sadd.s32 %s53, 1
      %s55 = scalar_select %p52, %s53, %s54
      %p58 = pneg %p52
      %p59 = scmp.eq.s32.totalorder %s17, 1
      %p60 = por %p58, %p59
      %p61 = scmp.ne.s32.totalorder %s53, %s56
      %p62 = scmp.eq.s32.totalorder %s17, 0
      %p63 = por %p61, %p62
      %p64 = scmp.ne.s32.totalorder %s53, %s56
      %p65 = scmp.eq.s32.totalorder %s22, 1
      %p66 = por %p64, %p65
      %p67 = scmp.ne.s32.totalorder %s56, %s57
      %p68 = scmp.eq.s32.totalorder %s22, 0
      %p69 = por %p67, %p68
      %p70 = scmp.ne.s32.totalorder %s56, %s57
      %p71 = scmp.eq.s32.totalorder %s23, 1
      %p72 = por %p70, %p71
      %p74 = scmp.ne.s32.totalorder %s57, %s73
      %p75 = scmp.eq.s32.totalorder %s23, 0
      %p76 = por %p74, %p75
      %s77 = ssub.s32 %s17, %s24
      %p78 = scmp.eq.s32.totalorder %s77, 0
      %s80 = sadd.s32 %s79, 1
      %s81 = scalar_select %p78, %s79, %s80
      %p84 = pneg %p78
      %p85 = scmp.eq.s32.totalorder %s17, 1
      %p86 = por %p84, %p85
      %p87 = scmp.ne.s32.totalorder %s79, %s82
      %p88 = scmp.eq.s32.totalorder %s17, 0
      %p89 = por %p87, %p88
      %p90 = scmp.ne.s32.totalorder %s79, %s82
      %p91 = scmp.eq.s32.totalorder %s22, 1
      %p92 = por %p90, %p91
      %p93 = scmp.ne.s32.totalorder %s82, %s83
      %p94 = scmp.eq.s32.totalorder %s22, 0
      %p95 = por %p93, %p94
      %p96 = scmp.ne.s32.totalorder %s82, %s83
      %p97 = scmp.eq.s32.totalorder %s23, 1
      %p98 = por %p96, %p97
      %p100 = scmp.ne.s32.totalorder %s83, %s99
      %p101 = scmp.eq.s32.totalorder %s23, 0
      %p102 = por %p100, %p101
      %p103 = scmp.le.s32.totalorder 1, %s17
      %p104 = scmp.lt.s32.totalorder %s17, 3
      %p105 = pnand %p103, %p104
      %p106 = pneg %p105
      // Predicated region
      $region9: #{tpu_custom_call.1} parent=5 // pred_check
        _
      $region10: #{tpu_custom_call.1} parent=5 // pred_check_branch
        %108 = sbr.rel (%p105) target = $region12
      $region11: #{tpu_custom_call.1} parent=5 // pred_region
        %s109 = ssub.s32 %s17, 1
      $region12: #{tpu_custom_call.1} parent=5 // pred_fallthru
        _
      %p110 = scmp.lt.s32.totalorder %s17, 2
      // Predicated region
      $region13: #{tpu_custom_call.1} parent=5 // pred_check
        %p111 = pneg %p110
      $region14: #{tpu_custom_call.1} parent=5 // pred_check_branch
        %113 = sbr.rel (%p111) target = $region16
      $region15: #{tpu_custom_call.1} parent=5 // pred_region
        // Predicated region
        $region17: #{tpu_custom_call.1} parent=15 // pred_check
          %p114 = pneg %p37
        $region18: #{tpu_custom_call.1} parent=15 // pred_check_branch
          %116 = sbr.rel (%p114) target = $region20
        $region19: #{tpu_custom_call.1} parent=15 // pred_region
          %s117 = sand.u32 %s27, 1
          %s118 = scalar_lea.sflag [#allocation3], %s117
          %s119 = sand.u32 %s27, 1
          %s120 = smul.addr %s119, 64
          %s121 = scalar_lea.vmem [#allocation2], %s120
          %123 = vsyncadd %s118, 0
          %s124 = smul.addr %s17, 8
          %s125 = smul.addr %s124, 8
          %s126 = scalar_lea.hbm %s0, %s125
          %s128 = sshll.u32 %s126, 4
          %s129 = int_to_ptr.hbm [resolvable:$true] %s128
          %s130 = sshll.u32 %s121, 4
          %s131 = int_to_ptr.vmem [resolvable:$true] %s130
          %133 = dma.hbm_to_vmem [thread:$0]  %s129, 1024, %s131, %s118
        $region20: #{tpu_custom_call.1} parent=15 // pred_fallthru
          _
        // Predicated region
        $region21: #{tpu_custom_call.1} parent=15 // pred_check
          %p134 = pneg %p63
        $region22: #{tpu_custom_call.1} parent=15 // pred_check_branch
          %136 = sbr.rel (%p134) target = $region24
        $region23: #{tpu_custom_call.1} parent=15 // pred_region
          %s137 = sand.u32 %s53, 1
          %s138 = scalar_lea.sflag [#allocation6], %s137
          %s139 = sand.u32 %s53, 1
          %s140 = smul.addr %s139, 8
          %s141 = scalar_lea.vmem [#allocation5], %s140
          %143 = vsyncadd %s138, 0
          %s144 = smul.addr %s17, 8
          %s145 = scalar_lea.hbm %s1, %s144
          %s147 = sshll.u32 %s145, 4
          %s148 = int_to_ptr.hbm [resolvable:$true] %s147
          %s149 = sshll.u32 %s141, 4
          %s150 = int_to_ptr.vmem [resolvable:$true] %s149
          %152 = dma.hbm_to_vmem [thread:$0]  %s148, 128, %s150, %s138
        $region24: #{tpu_custom_call.1} parent=15 // pred_fallthru
          _
      $region16: #{tpu_custom_call.1} parent=5 // pred_fallthru
        _
      %p153 = scmp.le.s32.totalorder 1, %s17
      %p154 = scmp.lt.s32.totalorder %s17, 3
      %p155 = pnand %p153, %p154
      %p156 = pneg %p155
      // Predicated region
      $region25: #{tpu_custom_call.1} parent=5 // pred_check
        _
      $region26: #{tpu_custom_call.1} parent=5 // pred_check_branch
        %158 = sbr.rel (%p155) target = $region28
      $region27: #{tpu_custom_call.1} parent=5 // pred_region
        %s159 = ssub.s32 %s17, 1
        %s160 = sand.u32 %s30, 1
        %s161 = scalar_lea.sflag [#allocation3], %s160
        %s162 = sand.u32 %s30, 1
        %s163 = smul.addr %s162, 64
        %s164 = scalar_lea.vmem [#allocation2], %s163
        // Predicated region
        $region29: #{tpu_custom_call.1} parent=27 // pred_check
          %p165 = pneg %p43
        $region30: #{tpu_custom_call.1} parent=27 // pred_check_branch
          %167 = sbr.rel (%p165) target = $region32
        $region31: #{tpu_custom_call.1} parent=27 // pred_region
          %169 = dma.done %s161, 1024
        $region32: #{tpu_custom_call.1} parent=27 // pred_fallthru
          _
        %s170 = sand.u32 %s56, 1
        %s171 = scalar_lea.sflag [#allocation6], %s170
        %s172 = sand.u32 %s56, 1
        %s173 = smul.addr %s172, 8
        %s174 = scalar_lea.vmem [#allocation5], %s173
        // Predicated region
        $region33: #{tpu_custom_call.1} parent=27 // pred_check
          %p175 = pneg %p69
        $region34: #{tpu_custom_call.1} parent=27 // pred_check_branch
          %177 = sbr.rel (%p175) target = $region36
        $region35: #{tpu_custom_call.1} parent=27 // pred_region
          %179 = dma.done %s171, 128
        $region36: #{tpu_custom_call.1} parent=27 // pred_fallthru
          _
        %s180 = sand.u32 %s30, 1
        %s181 = scalar_lea.sflag [#allocation3], %s180
        %s182 = sand.u32 %s30, 1
        %s183 = smul.addr %s182, 64
        %s184 = scalar_lea.vmem [#allocation2], %s183
        %p185 = pneg %p43
        %p186 = pneg %p40
        %s187 = sand.u32 %s56, 1
        %s188 = scalar_lea.sflag [#allocation6], %s187
        %s189 = sand.u32 %s56, 1
        %s190 = smul.addr %s189, 8
        %s191 = scalar_lea.vmem [#allocation5], %s190
        %p192 = pneg %p69
        %p193 = pneg %p66
        %p194 = pneg %p95
        %p195 = pneg %p92
        %s196 = sand.u32 %s82, 1
        %s197 = scalar_lea.sflag [#allocation4], %s196
        %s198 = sand.u32 %s82, 1
        %s199 = smul.addr %s198, 64
        %s200 = scalar_lea.vmem [#allocation7], %s199
        %v201 = vld [vmem:[%s164] sm:$0xff]
        %v202 = vld [vmem:[%s164 + $0x8] sm:$0xff]
        %v203 = vld [vmem:[%s164 + $0x10] sm:$0xff]
        %v204 = vld [vmem:[%s164 + $0x18] sm:$0xff]
        %v205 = vld [vmem:[%s164 + $0x20] sm:$0xff]
        %v206 = vld [vmem:[%s164 + $0x28] sm:$0xff]
        %v207 = vld [vmem:[%s164 + $0x30] sm:$0xff]
        %v208 = vld [vmem:[%s164 + $0x38] sm:$0xff]
        %v209 = vld [vmem:[%s174] sm:$0xff]
        %v210 = vadd.f32 %v201, %v209
        %v211 = vadd.f32 %v202, %v209
        %v212 = vadd.f32 %v203, %v209
        %v213 = vadd.f32 %v204, %v209
        %v214 = vadd.f32 %v205, %v209
        %v215 = vadd.f32 %v206, %v209
        %v216 = vadd.f32 %v207, %v209
        %v217 = vadd.f32 %v208, %v209
        %218 = vst [vmem:[%s200] sm:$0xff] %v210
        %219 = vst [vmem:[%s200 + $0x8] sm:$0xff] %v211
        %220 = vst [vmem:[%s200 + $0x10] sm:$0xff] %v212
        %221 = vst [vmem:[%s200 + $0x18] sm:$0xff] %v213
        %222 = vst [vmem:[%s200 + $0x20] sm:$0xff] %v214
        %223 = vst [vmem:[%s200 + $0x28] sm:$0xff] %v215
        %224 = vst [vmem:[%s200 + $0x30] sm:$0xff] %v216
        %225 = vst [vmem:[%s200 + $0x38] sm:$0xff] %v217
        %s226 = sand.u32 %s82, 1
        %s227 = scalar_lea.sflag [#allocation4], %s226
        %s228 = sand.u32 %s82, 1
        %s229 = smul.addr %s228, 64
        %s230 = scalar_lea.vmem [#allocation7], %s229
        // Predicated region
        $region37: #{tpu_custom_call.1} parent=27 // pred_check
          %p231 = pneg %p92
        $region38: #{tpu_custom_call.1} parent=27 // pred_check_branch
          %233 = sbr.rel (%p231) target = $region40
        $region39: #{tpu_custom_call.1} parent=27 // pred_region
          %235 = vsyncadd %s227, 0
          %s236 = smul.addr %s22, 8
          %s237 = smul.addr %s236, 8
          %s238 = scalar_lea.hbm %s2, %s237
          %s240 = sshll.u32 %s230, 4
          %s241 = int_to_ptr.vmem [resolvable:$true] %s240
          %s242 = sshll.u32 %s238, 4
          %s243 = int_to_ptr.hbm [resolvable:$true] %s242
          %245 = dma.vmem_to_hbm [thread:$0]  %s241, 1024, %s243, %s227
        $region40: #{tpu_custom_call.1} parent=27 // pred_fallthru
          _
      $region28: #{tpu_custom_call.1} parent=5 // pred_fallthru
        _
      %p246 = scmp.le.s32.totalorder 2, %s17
      // Predicated region
      $region41: #{tpu_custom_call.1} parent=5 // pred_check
        %p247 = pneg %p246
      $region42: #{tpu_custom_call.1} parent=5 // pred_check_branch
        %249 = sbr.rel (%p247) target = $region44
      $region43: #{tpu_custom_call.1} parent=5 // pred_region
        %s250 = ssub.s32 %s17, 2
        // Predicated region
        $region45: #{tpu_custom_call.1} parent=43 // pred_check
          %p251 = pneg %p98
        $region46: #{tpu_custom_call.1} parent=43 // pred_check_branch
          %253 = sbr.rel (%p251) target = $region48
        $region47: #{tpu_custom_call.1} parent=43 // pred_region
          %s254 = sand.u32 %s83, 1
          %s255 = scalar_lea.sflag [#allocation4], %s254
          %s256 = sand.u32 %s83, 1
          %s257 = smul.addr %s256, 64
          %s258 = scalar_lea.vmem [#allocation7], %s257
          %260 = dma.done %s255, 1024
        $region48: #{tpu_custom_call.1} parent=43 // pred_fallthru
          _
      $region44: #{tpu_custom_call.1} parent=5 // pred_fallthru
        _
    $region6: #{tpu_custom_call.1} parent=1 // loop_footer
      %s21 = sadd.s32 1, %s17
    $region7: #{tpu_custom_call.1} parent=1 // loop_footer_branch
      %16 = sbr.rel target = $region3
    $region8: #{tpu_custom_call.1} parent=1 // loop_exit
      _
    %261 = vsyncpa [#allocation3], 1
    %s262 = scalar_lea.sflag [#allocation3], 1
    %263 = vsyncpa %s262, 1
    %264 = vsyncpa [#allocation6], 1
    %s265 = scalar_lea.sflag [#allocation6], 1
    %266 = vsyncpa %s265, 1
    %267 = vsyncpa [#allocation4], 1
    %s268 = scalar_lea.sflag [#allocation4], 1
    %269 = vsyncpa %s268, 1

</llo_original>
